<compile_context>
chip_gen: v7x
topology: tpu7x:2x2x1
jax: 0.10.0
libtpu: 0.0.40
codegen_flags: <defaults>
</compile_context>

<pallas_src>
import functools

import jax
import jax.numpy as jnp
from jax import lax
from jax.experimental import pallas as pl
from jax.experimental.pallas import tpu as pltpu


def _round_up(x, m):
    return ((x + m - 1) // m) * m


# ----------------------------------------------------------------------------
# Kernel body: one (batch-block i, spatial-block k) grid step.
#   x_ref:   (Bt, HWt, C)   activation tile (channels-last: C on lanes)
#   w_ref:   (C, n_pad)     BN-folded Linear weight, zero-padded to 128 lanes
#   b_ref:   (1, n_pad)     BN-folded Linear bias,   zero-padded to 128 lanes
#   o_ref:   (Bt, n_pad)    logits tile (resident across the k axis)
#   acc_ref: (Bt, C) f32    running spatial sum (pooling accumulator)
# ----------------------------------------------------------------------------
def _pool_partial(x_ref, chunk=8):
    """Sum x_ref (Bt, HWt, C) over the HW axis in sublane-sized chunks (f32)."""
    bt, hwt, c = x_ref.shape
    n_chunks = hwt // chunk            # HWt is always a multiple of 8

    def body(j, acc):
        start = pl.multiple_of(j * chunk, chunk)
        blk = x_ref[:, pl.ds(start, chunk), :].astype(jnp.float32)
        return acc + jnp.sum(blk, axis=1)

    init = jnp.zeros((bt, c), jnp.float32)
    return lax.fori_loop(0, n_chunks, body, init, unroll=min(n_chunks, 8))


def classifier_kernel(x_ref, w_ref, b_ref, o_ref, acc_ref, *, inv_hw):
    k = pl.program_id(1)

    @pl.when(k == 0)
    def _init():
        acc_ref[...] = jnp.zeros_like(acc_ref)

    # Partial global-average-pool for this HW block (accumulate in f32).
    acc_ref[...] += _pool_partial(x_ref)

    @pl.when(k == pl.num_programs(1) - 1)
    def _finish():
        pooled = acc_ref[...] * inv_hw                       # pool + flatten: (Bt, C)
        # BatchNorm already folded into w/b -> single MXU push, lane-dense store.
        o_ref[...] = (jnp.dot(pooled, w_ref[...],
                              preferred_element_type=jnp.float32)
                      + b_ref[...])


# ----------------------------------------------------------------------------
# Wrapper: layout plumbing, tile selection, pallas_call.
# ----------------------------------------------------------------------------
def classifier_forward(x_nchw, params, *, n_classes,
                       batch_tile=None, hw_tile=None,
                       x_tile_bytes=4 << 20):
    """x_nchw: (B, C, H, W). Returns logits (B, n_classes) in float32."""
    B, C, H, W = x_nchw.shape
    HW = H * W

    # Channels-last so C sits on lanes (dense vregs / large contiguous DMA rows)
    # and the pooled (Bt, C) result is already MXU-contraction friendly.
    x = jnp.transpose(x_nchw.reshape(B, C, HW), (0, 2, 1))   # (B, HW, C)

    w_fused = params["w_fused"]                               # (C, n_pad)
    b_fused = params["b_fused"]                               # (1, n_pad)
    n_pad = w_fused.shape[1]

    # ---- batch tile (multiple of 8, or the full batch when it is tiny) ------
    if B <= 8:
        Bt = B
    else:
        Bt = 8 if batch_tile is None else batch_tile
        Bt = max(8, (min(Bt, B) // 8) * 8)
    B_pad = _round_up(B, Bt)

    # ---- spatial tile (multiple of 8), sized from a VMEM byte budget --------
    c_lanes = _round_up(C, 128)                 # last dim pads to 128 lanes in VMEM
    itemsize = jnp.dtype(x.dtype).itemsize
    row_bytes = Bt * c_lanes * itemsize         # one spatial row of the x tile
    if hw_tile is None:
        HWt = max(8, (x_tile_bytes // row_bytes) // 8 * 8)
    else:
        HWt = max(8, (hw_tile // 8) * 8)
    HWt = int(min(HWt, _round_up(HW, 8)))
    HW_pad = _round_up(HW, HWt)

    # Zero-pad batch / spatial (zeros do not perturb the spatial sum; the mean
    # divides by the true HW below).
    if (B_pad, HW_pad) != (B, HW):
        x = jnp.pad(x, ((0, B_pad - B), (0, HW_pad - HW), (0, 0)))

    grid = (B_pad // Bt, HW_pad // HWt)

    # Explicit scoped-VMEM budget: double-buffered operands + accumulator + slack.
    x_tile = Bt * HWt * c_lanes * itemsize
    w_bytes = _round_up(C, 8) * n_pad * 4
    b_bytes = 8 * n_pad * 4
    o_bytes = _round_up(Bt, 8) * n_pad * 4
    acc_bytes = _round_up(Bt, 8) * c_lanes * 4
    vmem_limit = 2 * (x_tile + w_bytes + b_bytes + o_bytes) + acc_bytes + (2 << 20)
    vmem_limit = int(min(max(vmem_limit, 8 << 20), 48 << 20))

    kernel = functools.partial(classifier_kernel, inv_hw=1.0 / HW)

    logits_pad = pl.pallas_call(
        kernel,
        out_shape=jax.ShapeDtypeStruct((B_pad, n_pad), jnp.float32),
        grid_spec=pltpu.PrefetchScalarGridSpec(
            num_scalar_prefetch=0,
            grid=grid,
            in_specs=[
                pl.BlockSpec((Bt, HWt, C), lambda i, k: (i, k, 0)),   # activations
                pl.BlockSpec((C, n_pad), lambda i, k: (0, 0)),        # resident weight
                pl.BlockSpec((1, n_pad), lambda i, k: (0, 0)),        # resident bias
            ],
            out_specs=pl.BlockSpec((Bt, n_pad), lambda i, k: (i, 0)),
            scratch_shapes=[pltpu.VMEM((Bt, C), jnp.float32)],        # pool accumulator
        ),
        compiler_params=pltpu.CompilerParams(
            dimension_semantics=("parallel", "arbitrary"),
            vmem_limit_bytes=vmem_limit,
        ),
    )(x, w_fused, b_fused)

    return logits_pad[:B, :n_classes]


# ----------------------------------------------------------------------------
# Parameter construction: BN folded into the Linear + 128-lane padding, once.
# ----------------------------------------------------------------------------
def init_params(key, feat_dim, n_classes, *, eps=1e-5, lane_pad=128):
    ks = jax.random.split(key, 6)
    n_pad = _round_up(max(n_classes, 1), lane_pad)

    gamma = 1.0 + 0.1 * jax.random.normal(ks[0], (feat_dim,), jnp.float32)
    beta = 0.1 * jax.random.normal(ks[1], (feat_dim,), jnp.float32)
    running_mean = 0.1 * jax.random.normal(ks[2], (feat_dim,), jnp.float32)
    running_var = 0.5 + jnp.abs(jax.random.normal(ks[3], (feat_dim,), jnp.float32))

    w = 0.05 * jax.random.normal(ks[4], (feat_dim, n_classes), jnp.float32)
    b = 0.05 * jax.random.normal(ks[5], (n_classes,), jnp.float32)

    # Fold inference-mode BatchNorm1d into the Linear (same affine algebra):
    #   y = ((p - mean) * scale + beta) @ W + b
    #     =  p @ (scale[:, None] * W) + ((beta - mean * scale) @ W + b)
    scale = gamma / jnp.sqrt(running_var + eps)
    shift = beta - running_mean * scale
    w_f = scale[:, None] * w                      # (feat_dim, n_classes)
    b_f = shift @ w + b                           # (n_classes,)

    w_fused = jnp.zeros((feat_dim, n_pad), jnp.float32).at[:, :n_classes].set(w_f)
    b_fused = jnp.zeros((1, n_pad), jnp.float32).at[0, :n_classes].set(b_f)

    return {
        # raw parameters kept only for the pure-JAX reference
        "gamma": gamma, "beta": beta,
        "running_mean": running_mean, "running_var": running_var,
        "w": w, "b": b,
        # what the kernel consumes
        "w_fused": w_fused, "b_fused": b_fused,
    }


if __name__ == "__main__":
    EPS = 1e-5
    key = jax.random.PRNGKey(0)
    k_x1, k_x2, k_p1, k_p2 = jax.random.split(key, 4)

    def ref_forward(x, p, eps):
        Bn, Cn = x.shape[0], x.shape[1]
        pooled = x.reshape(Bn, Cn, -1).mean(axis=-1)                 # pool + flatten
        scale = p["gamma"] / jnp.sqrt(p["running_var"] + eps)
        feat = (pooled - p["running_mean"]) * scale + p["beta"]      # BatchNorm1d (eval)
        return feat @ p["w"] + p["b"]                                # Linear

    # Case 1: small shape, single grid step on both axes.
    B, C, H, W, NC = 2, 32, 8, 8, 10
    x1 = jax.random.normal(k_x1, (B, C, H, W), jnp.float32)
    p1 = init_params(k_p1, feat_dim=C, n_classes=NC, eps=EPS)
    out1 = jax.block_until_ready(classifier_forward(x1, p1, n_classes=NC))
    ref1 = ref_forward(x1, p1, EPS)
    assert out1.shape == (B, NC)
    assert jnp.allclose(out1, ref1, atol=1e-4, rtol=1e-4)

    # Case 2: exercises batch tiling, zero padding (B=20, HW=49), and the
    # multi-step spatial-reduction (accumulator) path.
    B, C, H, W, NC = 20, 64, 7, 7, 12
    x2 = jax.random.normal(k_x2, (B, C, H, W), jnp.float32)
    p2 = init_params(k_p2, feat_dim=C, n_classes=NC, eps=EPS)
    out2 = jax.block_until_ready(
        classifier_forward(x2, p2, n_classes=NC, hw_tile=16))
    ref2 = ref_forward(x2, p2, EPS)
    assert out2.shape == (B, NC)
    assert jnp.allclose(out2, ref2, atol=1e-4, rtol=1e-4)

    print("KERNEL_OK")
</pallas_src>

<mosaic_0001>
module attributes {stable_mosaic.version = 11 : i64} {
  func.func @classifier_kernel(%arg0: i32, %arg1: i32, %arg2: memref<2x64x32xf32, #tpu.memory_space<vmem>>, %arg3: memref<32x128xf32, #tpu.memory_space<vmem>>, %arg4: memref<1x128xf32, #tpu.memory_space<vmem>>, %arg5: memref<2x128xf32, #tpu.memory_space<vmem>>, %arg6: memref<2x32xf32, #tpu.memory_space<vmem>>) attributes {dimension_semantics = [#tpu.dimension_semantics<parallel>, #tpu.dimension_semantics<arbitrary>], iteration_bounds = array<i64: 1, 1>, scalar_prefetch = 0 : i64, scratch_operands = 1 : i64, tpu.core_type = #tpu.core_type<tc>, window_params = [{transform_indices = @transform_0, window_bounds = array<i64: 2, 64, 32>}, {pipeline_mode = #tpu.pipeline_mode<synchronous>, transform_indices = @transform_1, window_bounds = array<i64: 32, 128>}, {pipeline_mode = #tpu.pipeline_mode<synchronous>, transform_indices = @transform_2, window_bounds = array<i64: 1, 128>}, {transform_indices = @transform_3, window_bounds = array<i64: 2, 128>}]} {
    %c0_i32 = arith.constant 0 : i32
    %0 = arith.cmpi eq, %arg1, %c0_i32 : i32
    %1 = arith.extui %0 : i1 to i32
    %c0_i32_0 = arith.constant 0 : i32
    %2 = arith.cmpi ne, %1, %c0_i32_0 : i32
    scf.if %2 {
      %cst_39 = arith.constant 0.000000e+00 : f32
      %58 = vector.broadcast %cst_39 : f32 to vector<2x32xf32>
      %c0_40 = arith.constant 0 : index
      %c0_41 = arith.constant 0 : index
      %59 = vector.load %arg6[%c0_40, %c0_41] : memref<2x32xf32, #tpu.memory_space<vmem>>, vector<2x32xf32>
      tpu.vector_store %arg6[%c0_40, %c0_41], %58 {strides = array<i32>} : memref<2x32xf32, #tpu.memory_space<vmem>>, vector<2x32xf32>,
    } else {
    }
    %c0 = arith.constant 0 : index
    %c0_1 = arith.constant 0 : index
    %3 = vector.load %arg6[%c0, %c0_1] : memref<2x32xf32, #tpu.memory_space<vmem>>, vector<2x32xf32>
    %cst = arith.constant 0.000000e+00 : f32
    %4 = vector.broadcast %cst : f32 to vector<2x32xf32>
    %c0_i32_2 = arith.constant 0 : i32
    %c8_i32 = arith.constant 8 : i32
    %5 = arith.muli %c0_i32_2, %c8_i32 : i32
    %6 = tpu.assume_multiple %5, 8 : i32
    %c0_3 = arith.constant 0 : index
    %7 = arith.index_cast %6 : i32 to index
    %c0_4 = arith.constant 0 : index
    %8 = vector.load %arg2[%c0_3, %7, %c0_4] : memref<2x64x32xf32, #tpu.memory_space<vmem>>, vector<2x8x32xf32>
    %cst_5 = arith.constant dense<0.000000e+00> : vector<2x32xf32>
    %9 = vector.multi_reduction <add>, %8, %cst_5 [1] : vector<2x8x32xf32> to vector<2x32xf32>
    %10 = arith.addf %4, %9 : vector<2x32xf32>
    %c1_i32 = arith.constant 1 : i32
    %c8_i32_6 = arith.constant 8 : i32
    %11 = arith.muli %c1_i32, %c8_i32_6 : i32
    %12 = tpu.assume_multiple %11, 8 : i32
    %c0_7 = arith.constant 0 : index
    %13 = arith.index_cast %12 : i32 to index
    %c0_8 = arith.constant 0 : index
    %14 = vector.load %arg2[%c0_7, %13, %c0_8] : memref<2x64x32xf32, #tpu.memory_space<vmem>>, vector<2x8x32xf32>
    %cst_9 = arith.constant dense<0.000000e+00> : vector<2x32xf32>
    %15 = vector.multi_reduction <add>, %14, %cst_9 [1] : vector<2x8x32xf32> to vector<2x32xf32>
    %16 = arith.addf %10, %15 : vector<2x32xf32>
    %c2_i32 = arith.constant 2 : i32
    %c8_i32_10 = arith.constant 8 : i32
    %17 = arith.muli %c2_i32, %c8_i32_10 : i32
    %18 = tpu.assume_multiple %17, 8 : i32
    %c0_11 = arith.constant 0 : index
    %19 = arith.index_cast %18 : i32 to index
    %c0_12 = arith.constant 0 : index
    %20 = vector.load %arg2[%c0_11, %19, %c0_12] : memref<2x64x32xf32, #tpu.memory_space<vmem>>, vector<2x8x32xf32>
    %cst_13 = arith.constant dense<0.000000e+00> : vector<2x32xf32>
    %21 = vector.multi_reduction <add>, %20, %cst_13 [1] : vector<2x8x32xf32> to vector<2x32xf32>
    %22 = arith.addf %16, %21 : vector<2x32xf32>
    %c3_i32 = arith.constant 3 : i32
    %c8_i32_14 = arith.constant 8 : i32
    %23 = arith.muli %c3_i32, %c8_i32_14 : i32
    %24 = tpu.assume_multiple %23, 8 : i32
    %c0_15 = arith.constant 0 : index
    %25 = arith.index_cast %24 : i32 to index
    %c0_16 = arith.constant 0 : index
    %26 = vector.load %arg2[%c0_15, %25, %c0_16] : memref<2x64x32xf32, #tpu.memory_space<vmem>>, vector<2x8x32xf32>
    %cst_17 = arith.constant dense<0.000000e+00> : vector<2x32xf32>
    %27 = vector.multi_reduction <add>, %26, %cst_17 [1] : vector<2x8x32xf32> to vector<2x32xf32>
    %28 = arith.addf %22, %27 : vector<2x32xf32>
    %c4_i32 = arith.constant 4 : i32
    %c8_i32_18 = arith.constant 8 : i32
    %29 = arith.muli %c4_i32, %c8_i32_18 : i32
    %30 = tpu.assume_multiple %29, 8 : i32
    %c0_19 = arith.constant 0 : index
    %31 = arith.index_cast %30 : i32 to index
    %c0_20 = arith.constant 0 : index
    %32 = vector.load %arg2[%c0_19, %31, %c0_20] : memref<2x64x32xf32, #tpu.memory_space<vmem>>, vector<2x8x32xf32>
    %cst_21 = arith.constant dense<0.000000e+00> : vector<2x32xf32>
    %33 = vector.multi_reduction <add>, %32, %cst_21 [1] : vector<2x8x32xf32> to vector<2x32xf32>
    %34 = arith.addf %28, %33 : vector<2x32xf32>
    %c5_i32 = arith.constant 5 : i32
    %c8_i32_22 = arith.constant 8 : i32
    %35 = arith.muli %c5_i32, %c8_i32_22 : i32
    %36 = tpu.assume_multiple %35, 8 : i32
    %c0_23 = arith.constant 0 : index
    %37 = arith.index_cast %36 : i32 to index
    %c0_24 = arith.constant 0 : index
    %38 = vector.load %arg2[%c0_23, %37, %c0_24] : memref<2x64x32xf32, #tpu.memory_space<vmem>>, vector<2x8x32xf32>
    %cst_25 = arith.constant dense<0.000000e+00> : vector<2x32xf32>
    %39 = vector.multi_reduction <add>, %38, %cst_25 [1] : vector<2x8x32xf32> to vector<2x32xf32>
    %40 = arith.addf %34, %39 : vector<2x32xf32>
    %c6_i32 = arith.constant 6 : i32
    %c8_i32_26 = arith.constant 8 : i32
    %41 = arith.muli %c6_i32, %c8_i32_26 : i32
    %42 = tpu.assume_multiple %41, 8 : i32
    %c0_27 = arith.constant 0 : index
    %43 = arith.index_cast %42 : i32 to index
    %c0_28 = arith.constant 0 : index
    %44 = vector.load %arg2[%c0_27, %43, %c0_28] : memref<2x64x32xf32, #tpu.memory_space<vmem>>, vector<2x8x32xf32>
    %cst_29 = arith.constant dense<0.000000e+00> : vector<2x32xf32>
    %45 = vector.multi_reduction <add>, %44, %cst_29 [1] : vector<2x8x32xf32> to vector<2x32xf32>
    %46 = arith.addf %40, %45 : vector<2x32xf32>
    %c7_i32 = arith.constant 7 : i32
    %c8_i32_30 = arith.constant 8 : i32
    %47 = arith.muli %c7_i32, %c8_i32_30 : i32
    %48 = tpu.assume_multiple %47, 8 : i32
    %c0_31 = arith.constant 0 : index
    %49 = arith.index_cast %48 : i32 to index
    %c0_32 = arith.constant 0 : index
    %50 = vector.load %arg2[%c0_31, %49, %c0_32] : memref<2x64x32xf32, #tpu.memory_space<vmem>>, vector<2x8x32xf32>
    %cst_33 = arith.constant dense<0.000000e+00> : vector<2x32xf32>
    %51 = vector.multi_reduction <add>, %50, %cst_33 [1] : vector<2x8x32xf32> to vector<2x32xf32>
    %52 = arith.addf %46, %51 : vector<2x32xf32>
    %c8_i32_34 = arith.constant 8 : i32
    %53 = arith.addf %3, %52 : vector<2x32xf32>
    %c0_35 = arith.constant 0 : index
    %c0_36 = arith.constant 0 : index
    %54 = vector.load %arg6[%c0_35, %c0_36] : memref<2x32xf32, #tpu.memory_space<vmem>>, vector<2x32xf32>
    tpu.vector_store %arg6[%c0_35, %c0_36], %53 {strides = array<i32>} : memref<2x32xf32, #tpu.memory_space<vmem>>, vector<2x32xf32>,
    %c0_i32_37 = arith.constant 0 : i32
    %55 = arith.cmpi eq, %arg1, %c0_i32_37 : i32
    %56 = arith.extui %55 : i1 to i32
    %c0_i32_38 = arith.constant 0 : i32
    %57 = arith.cmpi ne, %56, %c0_i32_38 : i32
    scf.if %57 {
      %c0_39 = arith.constant 0 : index
      %c0_40 = arith.constant 0 : index
      %58 = vector.load %arg6[%c0_39, %c0_40] : memref<2x32xf32, #tpu.memory_space<vmem>>, vector<2x32xf32>
      %cst_41 = arith.constant 1.562500e-02 : f32
      %59 = vector.broadcast %cst_41 : f32 to vector<2x32xf32>
      %60 = arith.mulf %58, %59 : vector<2x32xf32>
      %c0_42 = arith.constant 0 : index
      %c0_43 = arith.constant 0 : index
      %61 = vector.load %arg3[%c0_42, %c0_43] : memref<32x128xf32, #tpu.memory_space<vmem>>, vector<32x128xf32>
      %cst_44 = arith.constant dense<0.000000e+00> : vector<2x128xf32>
      %62 = tpu.matmul %60, %61, %cst_44 {dimension_numbers = #tpu.dot_dimension_numbers<[1], [0], [0], [1], [0, 0, 1, 1], [], []>} : vector<2x32xf32>, vector<32x128xf32>, vector<2x128xf32> -> vector<2x128xf32>
      %c0_45 = arith.constant 0 : index
      %c0_46 = arith.constant 0 : index
      %63 = vector.load %arg4[%c0_45, %c0_46] : memref<1x128xf32, #tpu.memory_space<vmem>>, vector<1x128xf32>
      %64 = vector.broadcast %63 : vector<1x128xf32> to vector<2x128xf32>
      %65 = arith.addf %62, %64 : vector<2x128xf32>
      %c0_47 = arith.constant 0 : index
      %c0_48 = arith.constant 0 : index
      %66 = vector.load %arg5[%c0_47, %c0_48] : memref<2x128xf32, #tpu.memory_space<vmem>>, vector<2x128xf32>
      tpu.vector_store %arg5[%c0_47, %c0_48], %65 {strides = array<i32>} : memref<2x128xf32, #tpu.memory_space<vmem>>, vector<2x128xf32>,
    } else {
    }
    return
  }
  func.func @transform_0(%arg0: i32, %arg1: i32) -> (i32, i32, i32) {
    %c0_i32 = arith.constant 0 : i32
    %c0_i32_0 = arith.constant 0 : i32
    return %arg0, %arg1, %c0_i32 : i32, i32, i32
  }
  func.func @transform_1(%arg0: i32, %arg1: i32) -> (i32, i32) {
    %c0_i32 = arith.constant 0 : i32
    %c0_i32_0 = arith.constant 0 : i32
    %c0_i32_1 = arith.constant 0 : i32
    return %c0_i32, %c0_i32_0 : i32, i32
  }
  func.func @transform_2(%arg0: i32, %arg1: i32) -> (i32, i32) {
    %c0_i32 = arith.constant 0 : i32
    %c0_i32_0 = arith.constant 0 : i32
    %c0_i32_1 = arith.constant 0 : i32
    return %c0_i32, %c0_i32_0 : i32, i32
  }
  func.func @transform_3(%arg0: i32, %arg1: i32) -> (i32, i32) {
    %c0_i32 = arith.constant 0 : i32
    %c0_i32_0 = arith.constant 0 : i32
    return %arg0, %c0_i32 : i32, i32
  }
}

</mosaic_0001>

<llo_original>
// kernel: tpu_custom_call.1
$region0: #{tpu_custom_call.1}
  #allocation0 [shape = 'u32[]', space=smem, size = 0x4, offset = 0x4, fixed_abs, tag = 'smem constant byte address 0x4 - core index']
  #allocation1 [shape = 'u32[144,128]{1,0:T(1,128)}', space=vmem, size = 0x12000, scoped, tag = 'internal scratch']
  #allocation2 [shape = 'f32[2,32]{1,0:T(2,128)}', space=vmem, size = 0x400, scoped, tag = 'scratch operand']
  %s0 = inlined_call_operand.vmem [shape: f32[2,64,32], index: 0, kind: input, shape index: {}]
  %s1 = inlined_call_operand.vmem [shape: f32[32,128], index: 1, kind: input, shape index: {}]
  %s2 = inlined_call_operand.vmem [shape: f32[1,128], index: 2, kind: input, shape index: {}]
  %s3 = inlined_call_operand.hbm [shape: f32[2,128], index: 3, kind: output, shape index: {}]
  %s4 = sld [smem:[#allocation0]]
  $region30: #{tpu_custom_call.1} parent=0
    _
  %s6 = ssub.s32 1, %s4
  %s7 = scalar_select 0, %s6, %s4
  $region1: #{tpu_custom_call.1} parent=0
    #allocation3 [shape = 'u8[1024]{0}', space=vmem, size = 0x400, scoped, tag = 'output window, operand 0, single buffered']
    #allocation4 [shape = 's32[1]{0}', space=sflag, size = 0x4, scoped, tag = 'scoped memory for tpu_custom_call.1']
    %8 = vsyncpa [#allocation4], 0
    // Predicated region
    $region2: #{tpu_custom_call.1} parent=1 // pred_check
      _
    $region3: #{tpu_custom_call.1} parent=1 // pred_check_branch
      %10 = sbr.rel (0) target = $region5
    $region4: #{tpu_custom_call.1} parent=1 // pred_region
      _
    $region5: #{tpu_custom_call.1} parent=1 // pred_fallthru
      _
    // Predicated region
    $region6: #{tpu_custom_call.1} parent=1 // pred_check
      _
    $region7: #{tpu_custom_call.1} parent=1 // pred_check_branch
      %12 = sbr.rel (0) target = $region9
    $region8: #{tpu_custom_call.1} parent=1 // pred_region
      _
    $region9: #{tpu_custom_call.1} parent=1 // pred_fallthru
      _
    // Predicated region
    $region10: #{tpu_custom_call.1} parent=1 // pred_check
      _
    $region11: #{tpu_custom_call.1} parent=1 // pred_check_branch
      %14 = sbr.rel (0) target = $region13
    $region12: #{tpu_custom_call.1} parent=1 // pred_region
      _
    $region13: #{tpu_custom_call.1} parent=1 // pred_fallthru
      _
    %p15 = scmp.eq.s32.totalorder 0, 0
    // Predicated region
    $region14: #{tpu_custom_call.1} parent=1 // pred_check
      %p16 = pneg %p15
    $region15: #{tpu_custom_call.1} parent=1 // pred_check_branch
      %18 = sbr.rel (%p16) target = $region17
    $region16: #{tpu_custom_call.1} parent=1 // pred_region
      %vm19 = vcmask 254976
      %20 = vst.msk [vmem:[#allocation2] sm:$0x3] %vm19, 0.0
    $region17: #{tpu_custom_call.1} parent=1 // pred_fallthru
      _
    %v21 = vld [vmem:[#allocation2] sm:$0x3]
    %v22 = vld [vmem:[%s0] sm:$0xff]
    %v23 = vld [vmem:[%s0 + $0x40] sm:$0xff]
    %vm24 = vcmask 261120
    %v25 = vsel %vm24, %v22, 0.0
    %v26 = vrot.slane %v25, 4
    %v27 = vadd.f32 %v25, %v26
    %v28 = vrot.slane %v27, 2
    %v29 = vadd.f32 %v27, %v28
    %v30 = vrot.slane %v29, 1
    %v31 = vadd.f32 %v29, %v30
    %v32 = vsel %vm24, %v23, 0.0
    %v33 = vrot.slane %v32, 4
    %v34 = vadd.f32 %v32, %v33
    %v35 = vrot.slane %v34, 2
    %v36 = vadd.f32 %v34, %v35
    %v37 = vrot.slane %v36, 1
    %v38 = vadd.f32 %v36, %v37
    %v39 = vadd.f32 %v31, 0.0
    %v40 = vadd.f32 %v38, 0.0
    %s41 = scalar_lea.vmem %s0, 8
    %v42 = vld [vmem:[%s41] sm:$0xff]
    %v43 = vld [vmem:[%s41 + $0x40] sm:$0xff]
    %v44 = vsel %vm24, %v42, 0.0
    %v45 = vrot.slane %v44, 4
    %v46 = vadd.f32 %v44, %v45
    %v47 = vrot.slane %v46, 2
    %v48 = vadd.f32 %v46, %v47
    %v49 = vrot.slane %v48, 1
    %v50 = vadd.f32 %v48, %v49
    %v51 = vsel %vm24, %v43, 0.0
    %v52 = vrot.slane %v51, 4
    %v53 = vadd.f32 %v51, %v52
    %v54 = vrot.slane %v53, 2
    %v55 = vadd.f32 %v53, %v54
    %v56 = vrot.slane %v55, 1
    %v57 = vadd.f32 %v55, %v56
    %v58 = vadd.f32 %v39, %v50
    %v59 = vadd.f32 %v40, %v57
    %s60 = scalar_lea.vmem %s0, 16
    %v61 = vld [vmem:[%s60] sm:$0xff]
    %v62 = vld [vmem:[%s60 + $0x40] sm:$0xff]
    %v63 = vsel %vm24, %v61, 0.0
    %v64 = vrot.slane %v63, 4
    %v65 = vadd.f32 %v63, %v64
    %v66 = vrot.slane %v65, 2
    %v67 = vadd.f32 %v65, %v66
    %v68 = vrot.slane %v67, 1
    %v69 = vadd.f32 %v67, %v68
    %v70 = vsel %vm24, %v62, 0.0
    %v71 = vrot.slane %v70, 4
    %v72 = vadd.f32 %v70, %v71
    %v73 = vrot.slane %v72, 2
    %v74 = vadd.f32 %v72, %v73
    %v75 = vrot.slane %v74, 1
    %v76 = vadd.f32 %v74, %v75
    %v77 = vadd.f32 %v58, %v69
    %v78 = vadd.f32 %v59, %v76
    %s79 = scalar_lea.vmem %s0, 24
    %v80 = vld [vmem:[%s79] sm:$0xff]
    %v81 = vld [vmem:[%s79 + $0x40] sm:$0xff]
    %v82 = vsel %vm24, %v80, 0.0
    %v83 = vrot.slane %v82, 4
    %v84 = vadd.f32 %v82, %v83
    %v85 = vrot.slane %v84, 2
    %v86 = vadd.f32 %v84, %v85
    %v87 = vrot.slane %v86, 1
    %v88 = vadd.f32 %v86, %v87
    %v89 = vsel %vm24, %v81, 0.0
    %v90 = vrot.slane %v89, 4
    %v91 = vadd.f32 %v89, %v90
    %v92 = vrot.slane %v91, 2
    %v93 = vadd.f32 %v91, %v92
    %v94 = vrot.slane %v93, 1
    %v95 = vadd.f32 %v93, %v94
    %v96 = vadd.f32 %v77, %v88
    %v97 = vadd.f32 %v78, %v95
    %s98 = scalar_lea.vmem %s0, 32
    %v99 = vld [vmem:[%s98] sm:$0xff]
    %v100 = vld [vmem:[%s98 + $0x40] sm:$0xff]
    %v101 = vsel %vm24, %v99, 0.0
    %v102 = vrot.slane %v101, 4
    %v103 = vadd.f32 %v101, %v102
    %v104 = vrot.slane %v103, 2
    %v105 = vadd.f32 %v103, %v104
    %v106 = vrot.slane %v105, 1
    %v107 = vadd.f32 %v105, %v106
    %v108 = vsel %vm24, %v100, 0.0
    %v109 = vrot.slane %v108, 4
    %v110 = vadd.f32 %v108, %v109
    %v111 = vrot.slane %v110, 2
    %v112 = vadd.f32 %v110, %v111
    %v113 = vrot.slane %v112, 1
    %v114 = vadd.f32 %v112, %v113
    %v115 = vadd.f32 %v96, %v107
    %v116 = vadd.f32 %v97, %v114
    %s117 = scalar_lea.vmem %s0, 40
    %v118 = vld [vmem:[%s117] sm:$0xff]
    %v119 = vld [vmem:[%s117 + $0x40] sm:$0xff]
    %v120 = vsel %vm24, %v118, 0.0
    %v121 = vrot.slane %v120, 4
    %v122 = vadd.f32 %v120, %v121
    %v123 = vrot.slane %v122, 2
    %v124 = vadd.f32 %v122, %v123
    %v125 = vrot.slane %v124, 1
    %v126 = vadd.f32 %v124, %v125
    %v127 = vsel %vm24, %v119, 0.0
    %v128 = vrot.slane %v127, 4
    %v129 = vadd.f32 %v127, %v128
    %v130 = vrot.slane %v129, 2
    %v131 = vadd.f32 %v129, %v130
    %v132 = vrot.slane %v131, 1
    %v133 = vadd.f32 %v131, %v132
    %v134 = vadd.f32 %v115, %v126
    %v135 = vadd.f32 %v116, %v133
    %s136 = scalar_lea.vmem %s0, 48
    %v137 = vld [vmem:[%s136] sm:$0xff]
    %v138 = vld [vmem:[%s136 + $0x40] sm:$0xff]
    %v139 = vsel %vm24, %v137, 0.0
    %v140 = vrot.slane %v139, 4
    %v141 = vadd.f32 %v139, %v140
    %v142 = vrot.slane %v141, 2
    %v143 = vadd.f32 %v141, %v142
    %v144 = vrot.slane %v143, 1
    %v145 = vadd.f32 %v143, %v144
    %v146 = vsel %vm24, %v138, 0.0
    %v147 = vrot.slane %v146, 4
    %v148 = vadd.f32 %v146, %v147
    %v149 = vrot.slane %v148, 2
    %v150 = vadd.f32 %v148, %v149
    %v151 = vrot.slane %v150, 1
    %v152 = vadd.f32 %v150, %v151
    %v153 = vadd.f32 %v134, %v145
    %v154 = vadd.f32 %v135, %v152
    %s155 = scalar_lea.vmem %s0, 56
    %v156 = vld [vmem:[%s155] sm:$0xff]
    %v157 = vld [vmem:[%s155 + $0x40] sm:$0xff]
    %v158 = vsel %vm24, %v156, 0.0
    %v159 = vrot.slane %v158, 4
    %v160 = vadd.f32 %v158, %v159
    %v161 = vrot.slane %v160, 2
    %v162 = vadd.f32 %v160, %v161
    %v163 = vrot.slane %v162, 1
    %v164 = vadd.f32 %v162, %v163
    %v165 = vsel %vm24, %v157, 0.0
    %v166 = vrot.slane %v165, 4
    %v167 = vadd.f32 %v165, %v166
    %v168 = vrot.slane %v167, 2
    %v169 = vadd.f32 %v167, %v168
    %v170 = vrot.slane %v169, 1
    %v171 = vadd.f32 %v169, %v170
    %v172 = vadd.f32 %v153, %v164
    %v173 = vadd.f32 %v154, %v171
    %vm176 = vcmask 1041409
    %v177 = vsel %vm176, %v173, %v172
    %v179 = vadd.f32 %v21, %v177
    %vm180 = vcmask 254976
    %181 = vst.msk [vmem:[#allocation2] sm:$0x3] %vm180, %v179
    // Predicated region
    $region18: #{tpu_custom_call.1} parent=1 // pred_check
      %p182 = pneg %p15
    $region19: #{tpu_custom_call.1} parent=1 // pred_check_branch
      %184 = sbr.rel (%p182) target = $region21
    $region20: #{tpu_custom_call.1} parent=1 // pred_region
      %v185 = vld [vmem:[#allocation2] sm:$0x3]
      %v186 = vmul.f32 %v185, 0.015625
      %v187 = vld [vmem:[%s1] sm:$0xff]
      %v188 = vld [vmem:[%s1 + $0x8] sm:$0xff]
      %v189 = vld [vmem:[%s1 + $0x10] sm:$0xff]
      %v190 = vld [vmem:[%s1 + $0x18] sm:$0xff]
      %v191 = vld [vmem:[%s2] sm:$0x1]
      %v193 = vlaneseq
      %v194 = vshrl.u32 %v193, 7
      %v195 = vsub.s32 0, %v194
      %v196 = vrot.slane %v191, %v195
      %v199 = vsel %vm24, %v186, 0
      %201 = vmatprep.subr.mxu0 0.0
      %202 = vmatpush1.msra.mxu0 %v187
      %203 = vmatprep.subr.mxu0 0.0
      %204 = vmatpush1.msra.mxu0 %v188
      %205 = vmatprep.subr.mxu0 0.0
      %206 = vmatpush1.msra.mxu0 %v189
      %207 = vmatprep.subr.mxu0 0.0
      %208 = vmatpush1.msra.mxu0 %v190
      %209 = vmatprep.subr.mxu0 0.0
      %210 = vmatpush1.msra.mxu0 0.0
      %211 = vmatprep.subr.mxu0 0.0
      %212 = vmatpush1.msra.mxu0 0.0
      %213 = vmatprep.subr.mxu0 0.0
      %214 = vmatpush1.msra.mxu0 0.0
      %215 = vmatprep.subr.mxu0 0.0
      %216 = vmatpush1.msra.mxu0 0.0
      %217 = vmatprep.subr.mxu0 0.0
      %218 = vmatpush1.msra.mxu0 0.0
      %219 = vmatprep.subr.mxu0 0.0
      %220 = vmatpush1.msra.mxu0 0.0
      %221 = vmatprep.subr.mxu0 0.0
      %222 = vmatpush1.msra.mxu0 0.0
      %223 = vmatprep.subr.mxu0 0.0
      %224 = vmatpush1.msra.mxu0 0.0
      %225 = vmatprep.subr.mxu0 0.0
      %226 = vmatpush1.msra.mxu0 0.0
      %227 = vmatprep.subr.mxu0 0.0
      %228 = vmatpush1.msra.mxu0 0.0
      %229 = vmatprep.subr.mxu0 0.0
      %230 = vmatpush1.msra.mxu0 0.0
      %231 = vmatprep.subr.mxu0 0.0
      %232 = vmatpush1.msra.mxu0 0.0
      %233 = vmatprep.subr.mxu0 0.0
      %234 = vmatpush1.msra.mxu0 0.0
      %235 = vmatprep.subr.mxu0 0.0
      %236 = vmatpush1.msra.mxu0 0.0
      %237 = vmatprep.subr.mxu0 0.0
      %238 = vmatpush1.msra.mxu0 0.0
      %239 = vmatprep.subr.mxu0 0.0
      %240 = vmatpush1.msra.mxu0 0.0
      %241 = vmatprep.subr.mxu0 0.0
      %242 = vmatpush1.msra.mxu0 0.0
      %243 = vmatprep.subr.mxu0 0.0
      %244 = vmatpush1.msra.mxu0 0.0
      %245 = vmatprep.subr.mxu0 0.0
      %246 = vmatpush1.msra.mxu0 0.0
      %247 = vmatprep.subr.mxu0 0.0
      %248 = vmatpush1.msra.mxu0 0.0
      %249 = vmatprep.subr.mxu0 0.0
      %250 = vmatpush1.msra.mxu0 0.0
      %251 = vmatprep.subr.mxu0 0.0
      %252 = vmatpush1.msra.mxu0 0.0
      %253 = vmatprep.subr.mxu0 0.0
      %254 = vmatpush1.msra.mxu0 0.0
      %255 = vmatprep.subr.mxu0 0.0
      %256 = vmatpush1.msra.mxu0 0.0
      %257 = vmatprep.subr.mxu0 0.0
      %258 = vmatpush1.msra.mxu0 0.0
      %259 = vmatprep.subr.mxu0 0.0
      %260 = vmatpush1.msra.mxu0 0.0
      %261 = vmatprep.subr.mxu0 0.0
      %262 = vmatpush1.msra.mxu0 0.0
      %263 = vmatprep.subr.mxu0 0.0
      %264 = vmatpush1.msra.mxu0 0.0
      %265 = vmatprep.mubr.f32.mxu0 0.0
      %266 = vmatmul.mubr.f32.gmra.mrb[0].mxu0 %v199
      %v267 = vpop.f32.mrb[0].mxu0
      %v268 = vadd.f32 %v196, %v267
      %v269 = vpop.f32.mrb[0].mxu0
      %270 = vdwg.mxu0
      %271 = vst [vmem:[#allocation3] sm:$0x3] %v268
    $region21: #{tpu_custom_call.1} parent=1 // pred_fallthru
      _
    // Predicated region
    $region22: #{tpu_custom_call.1} parent=1 // pred_check
      _
    $region23: #{tpu_custom_call.1} parent=1 // pred_check_branch
      %273 = sbr.rel (0) target = $region25
    $region24: #{tpu_custom_call.1} parent=1 // pred_region
      %s275 = ssub.s32 32, 32
      %276 = vsyncadd [#allocation4], %s275
      %s278 = sshll.u32 [#allocation3], 4
      %s279 = int_to_ptr.vmem [resolvable:$true] %s278
      %281 = dma.vmem_to_hbm [thread:$0]  %s279, 32, %s3, [#allocation4]
    $region25: #{tpu_custom_call.1} parent=1 // pred_fallthru
      _
    // Predicated region
    $region26: #{tpu_custom_call.1} parent=1 // pred_check
      _
    $region27: #{tpu_custom_call.1} parent=1 // pred_check_branch
      %283 = sbr.rel (0) target = $region29
    $region28: #{tpu_custom_call.1} parent=1 // pred_region
      %284 = dma.done [#allocation4], 32
    $region29: #{tpu_custom_call.1} parent=1 // pred_fallthru
      _
    %285 = vsyncpa [#allocation4], 1

</llo_original>
